<compile_context>
chip_gen: v6e
topology: v6e:2x2x1
jax: 0.10.0
libtpu: 0.0.40
codegen_flags: <defaults>
</compile_context>

<pallas_src>
import numpy as np
import jax
import jax.numpy as jnp
from jax.experimental import pallas as pl
from jax.experimental.pallas import tpu as pltpu


def bilinear_matrix(in_size, out_size):
    """Row-stochastic matrix M s.t. (M @ x) is bilinear upsampling with
    align_corners=True (semantics of nn.UpsamplingBilinear2d)."""
    m = np.zeros((out_size, in_size), np.float32)
    scale = (in_size - 1) / (out_size - 1) if out_size > 1 else 0.0
    for o in range(out_size):
        src = o * scale
        i0 = int(np.floor(src))
        i1 = min(i0 + 1, in_size - 1)
        f = src - i0
        m[o, i0] += 1.0 - f
        m[o, i1] += f
    return m


def up_module_ucba(x_nchw, weight, gamma, beta, run_mean, run_var, eps=1e-5):
    """UpModule(mode='UCBA') forward.  x_nchw: (N, Cin, H, W) float32.
    weight: (Cout, Cin, 3, 3).  Returns (N, Cout, 2H, 2W)."""
    N, Cin, H, W = x_nchw.shape
    Cout = weight.shape[0]
    OH, OW = 2 * H, 2 * W
    WC = W * Cin           # contraction width of the fused matmul
    OWC = OW * Cout        # lane-dense output width (256 at these sizes)

    # ---- glue: layout + parameter preprocessing (wrapper, not the kernel) ----
    # NCHW -> (N, H, W*Cin), channels-last flattened so W*Cin is the lane dim.
    x = jnp.transpose(x_nchw, (0, 2, 3, 1)).reshape(N, H, WC)

    # H upsample with zero halo rows (= the conv's H padding), pre-sliced per dy.
    mh = bilinear_matrix(H, OH)                          # (OH, H)
    mh_pad = np.zeros((OH + 2, H), np.float32)
    mh_pad[1:OH + 1] = mh
    mh3 = np.stack([mh_pad[d:d + OH] for d in range(3)])  # (3, OH, H)

    # W upsample with zero halo rows, shifted per dx (the conv's W padding).
    mw = bilinear_matrix(W, OW)                          # (OW, W)
    mw_pad = np.zeros((OW + 2, W), np.float32)
    mw_pad[1:OW + 1] = mw
    ms = np.stack([mw_pad[d:d + OW] for d in range(3)])  # (3, OW, W); ms[dx, ow, w]

    # Fold BatchNorm (inference form, running stats) into the conv weights.
    inv_std = 1.0 / jnp.sqrt(run_var + eps)
    bn_scale = gamma * inv_std                           # (Cout,)
    bn_bias = beta - run_mean * bn_scale                 # (Cout,)
    w_scaled = weight * bn_scale[:, None, None, None]    # (Cout, Cin, 3, 3)

    # Fused upsample-W + conv-row + channel-mix + BN-scale matrices:
    #   R[dy, w*Cin+cin, ow*Cout+cout] = sum_dx ms[dx, ow, w] * w_scaled[cout, cin, dy, dx]
    R = jnp.einsum('xow,tcyx->ywcot', jnp.asarray(ms), w_scaled)
    R = R.reshape(3, WC, OWC)                            # (3, W*Cin, OW*Cout)

    bias_row = jnp.tile(bn_bias, OW).reshape(1, OWC)     # column ow*Cout+cout -> bias[cout]

    # ---- Pallas kernel: 6 small matmuls + bias + ReLU, lane-dense output ----
    def kernel(x_ref, mh_ref, r_ref, bias_ref, o_ref):
        xb = x_ref[0]                                                    # (H, W*Cin)
        acc = jnp.dot(
            jnp.dot(mh_ref[0], xb, preferred_element_type=jnp.float32),
            r_ref[0], preferred_element_type=jnp.float32)                # (OH, OW*Cout)
        for dy in (1, 2):
            acc = acc + jnp.dot(
                jnp.dot(mh_ref[dy], xb, preferred_element_type=jnp.float32),
                r_ref[dy], preferred_element_type=jnp.float32)
        o_ref[0] = jnp.maximum(acc + bias_ref[...], 0.0)                 # bias + ReLU

    # TODO(synk): for production DBFace feature-map sizes (H,W ~ 40-160), add an
    # OH row-tile grid axis (row-slice mh3 per tile) and set vmem_limit_bytes to
    # bound the per-step slab on v7x's smaller VMEM.
    out = pl.pallas_call(
        kernel,
        out_shape=jax.ShapeDtypeStruct((N, OH, OWC), jnp.float32),
        grid_spec=pltpu.PrefetchScalarGridSpec(
            num_scalar_prefetch=0,
            grid=(N,),
            in_specs=[
                pl.BlockSpec((1, H, WC), lambda n: (n, 0, 0)),
                pl.BlockSpec((3, OH, H), lambda n: (0, 0, 0)),
                pl.BlockSpec((3, WC, OWC), lambda n: (0, 0, 0)),
                pl.BlockSpec((1, OWC), lambda n: (0, 0)),
            ],
            out_specs=pl.BlockSpec((1, OH, OWC), lambda n: (n, 0, 0)),
        ),
        compiler_params=pltpu.CompilerParams(
            dimension_semantics=("parallel",)),
    )(x, jnp.asarray(mh3), R, bias_row)

    out = out.reshape(N, OH, OW, Cout)
    return jnp.transpose(out, (0, 3, 1, 2))     # back to NCHW


def reference(x_nchw, weight, gamma, beta, run_mean, run_var, eps=1e-5):
    """Pure-JAX reference with identical semantics (for validation)."""
    # TODO(synk): upsample uses the same align_corners=True matrix as the kernel
    # (not cross-checked against torch's nn.UpsamplingBilinear2d in-script).
    N, Cin, H, W = x_nchw.shape
    mh = jnp.asarray(bilinear_matrix(H, 2 * H))
    mw = jnp.asarray(bilinear_matrix(W, 2 * W))
    up = jnp.einsum('oh,nchw->ncow', mh, x_nchw)
    up = jnp.einsum('pw,ncow->ncop', mw, up)
    out = jax.lax.conv_general_dilated(
        up, weight, window_strides=(1, 1), padding='SAME',
        dimension_numbers=('NCHW', 'OIHW', 'NCHW'))
    inv_std = 1.0 / jnp.sqrt(run_var + eps)
    scale = gamma * inv_std
    bias = beta - run_mean * scale
    out = out * scale[None, :, None, None] + bias[None, :, None, None]
    return jnp.maximum(out, 0.0)


if __name__ == "__main__":
    N, Cin, H, W = 2, 4, 16, 16
    Cout = 8

    key = jax.random.PRNGKey(0)
    kx, kw_, kg, kb, km, kv = jax.random.split(key, 6)

    x = jax.random.normal(kx, (N, Cin, H, W), jnp.float32)
    # deterministic synthetic parameters (shapes from UpModule.__init__ / CBAModule)
    weight = jax.random.normal(kw_, (Cout, Cin, 3, 3), jnp.float32) * 0.1
    gamma = 1.0 + 0.1 * jax.random.normal(kg, (Cout,), jnp.float32)
    beta = 0.1 * jax.random.normal(kb, (Cout,), jnp.float32)
    run_mean = 0.1 * jax.random.normal(km, (Cout,), jnp.float32)
    run_var = 1.0 + 0.1 * jax.nn.sigmoid(jax.random.normal(kv, (Cout,), jnp.float32))
    # TODO(synk): BatchNorm is applied in inference mode (running stats);
    # PyTorch training-mode batch statistics are not reproduced here.

    y = up_module_ucba(x, weight, gamma, beta, run_mean, run_var)
    y = jax.block_until_ready(y)

    y_ref = reference(x, weight, gamma, beta, run_mean, run_var)
    assert y.shape == (N, Cout, 2 * H, 2 * W)
    assert jnp.allclose(y, y_ref, rtol=1e-4, atol=1e-4), "mismatch vs JAX reference"

    print("KERNEL_OK")
</pallas_src>

<mosaic_0001>
module attributes {stable_mosaic.version = 11 : i64} {
  func.func @kernel(%arg0: i32, %arg1: memref<1x16x64xf32, #tpu.memory_space<vmem>>, %arg2: memref<3x32x16xf32, #tpu.memory_space<vmem>>, %arg3: memref<3x64x256xf32, #tpu.memory_space<vmem>>, %arg4: memref<1x256xf32, #tpu.memory_space<vmem>>, %arg5: memref<1x32x256xf32, #tpu.memory_space<vmem>>) attributes {dimension_semantics = [#tpu.dimension_semantics<parallel>], iteration_bounds = array<i64: 2>, scalar_prefetch = 0 : i64, scratch_operands = 0 : i64, tpu.core_type = #tpu.core_type<tc>, window_params = [{transform_indices = @transform_0, window_bounds = array<i64: 1, 16, 64>}, {pipeline_mode = #tpu.pipeline_mode<synchronous>, transform_indices = @transform_1, window_bounds = array<i64: 3, 32, 16>}, {pipeline_mode = #tpu.pipeline_mode<synchronous>, transform_indices = @transform_2, window_bounds = array<i64: 3, 64, 256>}, {pipeline_mode = #tpu.pipeline_mode<synchronous>, transform_indices = @transform_3, window_bounds = array<i64: 1, 256>}, {transform_indices = @transform_4, window_bounds = array<i64: 1, 32, 256>}]} {
    %c0 = arith.constant 0 : index
    %c0_0 = arith.constant 0 : index
    %c0_1 = arith.constant 0 : index
    %0 = vector.load %arg1[%c0, %c0_0, %c0_1] : memref<1x16x64xf32, #tpu.memory_space<vmem>>, vector<1x16x64xf32>
    %1 = vector.shape_cast %0 : vector<1x16x64xf32> to vector<16x64xf32>
    %c0_2 = arith.constant 0 : index
    %c0_3 = arith.constant 0 : index
    %c0_4 = arith.constant 0 : index
    %2 = vector.load %arg2[%c0_2, %c0_3, %c0_4] : memref<3x32x16xf32, #tpu.memory_space<vmem>>, vector<1x32x16xf32>
    %3 = vector.shape_cast %2 : vector<1x32x16xf32> to vector<32x16xf32>
    %cst = arith.constant dense<0.000000e+00> : vector<32x64xf32>
    %4 = tpu.matmul %3, %1, %cst {dimension_numbers = #tpu.dot_dimension_numbers<[1], [0], [0], [1], [0, 0, 1, 1], [], []>} : vector<32x16xf32>, vector<16x64xf32>, vector<32x64xf32> -> vector<32x64xf32>
    %c0_5 = arith.constant 0 : index
    %c0_6 = arith.constant 0 : index
    %c0_7 = arith.constant 0 : index
    %5 = vector.load %arg3[%c0_5, %c0_6, %c0_7] : memref<3x64x256xf32, #tpu.memory_space<vmem>>, vector<1x64x256xf32>
    %6 = vector.shape_cast %5 : vector<1x64x256xf32> to vector<64x256xf32>
    %cst_8 = arith.constant dense<0.000000e+00> : vector<32x256xf32>
    %7 = tpu.matmul %4, %6, %cst_8 {dimension_numbers = #tpu.dot_dimension_numbers<[1], [0], [0], [1], [0, 0, 1, 1], [], []>} : vector<32x64xf32>, vector<64x256xf32>, vector<32x256xf32> -> vector<32x256xf32>
    %c1 = arith.constant 1 : index
    %c0_9 = arith.constant 0 : index
    %c0_10 = arith.constant 0 : index
    %8 = vector.load %arg2[%c1, %c0_9, %c0_10] : memref<3x32x16xf32, #tpu.memory_space<vmem>>, vector<1x32x16xf32>
    %9 = vector.shape_cast %8 : vector<1x32x16xf32> to vector<32x16xf32>
    %cst_11 = arith.constant dense<0.000000e+00> : vector<32x64xf32>
    %10 = tpu.matmul %9, %1, %cst_11 {dimension_numbers = #tpu.dot_dimension_numbers<[1], [0], [0], [1], [0, 0, 1, 1], [], []>} : vector<32x16xf32>, vector<16x64xf32>, vector<32x64xf32> -> vector<32x64xf32>
    %c1_12 = arith.constant 1 : index
    %c0_13 = arith.constant 0 : index
    %c0_14 = arith.constant 0 : index
    %11 = vector.load %arg3[%c1_12, %c0_13, %c0_14] : memref<3x64x256xf32, #tpu.memory_space<vmem>>, vector<1x64x256xf32>
    %12 = vector.shape_cast %11 : vector<1x64x256xf32> to vector<64x256xf32>
    %cst_15 = arith.constant dense<0.000000e+00> : vector<32x256xf32>
    %13 = tpu.matmul %10, %12, %cst_15 {dimension_numbers = #tpu.dot_dimension_numbers<[1], [0], [0], [1], [0, 0, 1, 1], [], []>} : vector<32x64xf32>, vector<64x256xf32>, vector<32x256xf32> -> vector<32x256xf32>
    %14 = arith.addf %7, %13 : vector<32x256xf32>
    %c2 = arith.constant 2 : index
    %c0_16 = arith.constant 0 : index
    %c0_17 = arith.constant 0 : index
    %15 = vector.load %arg2[%c2, %c0_16, %c0_17] : memref<3x32x16xf32, #tpu.memory_space<vmem>>, vector<1x32x16xf32>
    %16 = vector.shape_cast %15 : vector<1x32x16xf32> to vector<32x16xf32>
    %cst_18 = arith.constant dense<0.000000e+00> : vector<32x64xf32>
    %17 = tpu.matmul %16, %1, %cst_18 {dimension_numbers = #tpu.dot_dimension_numbers<[1], [0], [0], [1], [0, 0, 1, 1], [], []>} : vector<32x16xf32>, vector<16x64xf32>, vector<32x64xf32> -> vector<32x64xf32>
    %c2_19 = arith.constant 2 : index
    %c0_20 = arith.constant 0 : index
    %c0_21 = arith.constant 0 : index
    %18 = vector.load %arg3[%c2_19, %c0_20, %c0_21] : memref<3x64x256xf32, #tpu.memory_space<vmem>>, vector<1x64x256xf32>
    %19 = vector.shape_cast %18 : vector<1x64x256xf32> to vector<64x256xf32>
    %cst_22 = arith.constant dense<0.000000e+00> : vector<32x256xf32>
    %20 = tpu.matmul %17, %19, %cst_22 {dimension_numbers = #tpu.dot_dimension_numbers<[1], [0], [0], [1], [0, 0, 1, 1], [], []>} : vector<32x64xf32>, vector<64x256xf32>, vector<32x256xf32> -> vector<32x256xf32>
    %21 = arith.addf %14, %20 : vector<32x256xf32>
    %c0_23 = arith.constant 0 : index
    %c0_24 = arith.constant 0 : index
    %22 = vector.load %arg4[%c0_23, %c0_24] : memref<1x256xf32, #tpu.memory_space<vmem>>, vector<1x256xf32>
    %23 = vector.broadcast %22 : vector<1x256xf32> to vector<32x256xf32>
    %24 = arith.addf %21, %23 : vector<32x256xf32>
    %cst_25 = arith.constant 0.000000e+00 : f32
    %25 = vector.broadcast %cst_25 : f32 to vector<32x256xf32>
    %26 = arith.maximumf %24, %25 : vector<32x256xf32>
    %c0_26 = arith.constant 0 : index
    %c0_27 = arith.constant 0 : index
    %c0_28 = arith.constant 0 : index
    %27 = vector.load %arg5[%c0_26, %c0_27, %c0_28] : memref<1x32x256xf32, #tpu.memory_space<vmem>>, vector<1x32x256xf32>
    %28 = vector.shape_cast %27 : vector<1x32x256xf32> to vector<32x256xf32>
    %29 = vector.shape_cast %26 : vector<32x256xf32> to vector<1x32x256xf32>
    tpu.vector_store %arg5[%c0_26, %c0_27, %c0_28], %29 {strides = array<i32>} : memref<1x32x256xf32, #tpu.memory_space<vmem>>, vector<1x32x256xf32>,
    return
  }
  func.func @transform_0(%arg0: i32) -> (i32, i32, i32) {
    %c0_i32 = arith.constant 0 : i32
    %c0_i32_0 = arith.constant 0 : i32
    %c0_i32_1 = arith.constant 0 : i32
    return %arg0, %c0_i32, %c0_i32_0 : i32, i32, i32
  }
  func.func @transform_1(%arg0: i32) -> (i32, i32, i32) {
    %c0_i32 = arith.constant 0 : i32
    %c0_i32_0 = arith.constant 0 : i32
    %c0_i32_1 = arith.constant 0 : i32
    %c0_i32_2 = arith.constant 0 : i32
    return %c0_i32, %c0_i32_0, %c0_i32_1 : i32, i32, i32
  }
  func.func @transform_2(%arg0: i32) -> (i32, i32, i32) {
    %c0_i32 = arith.constant 0 : i32
    %c0_i32_0 = arith.constant 0 : i32
    %c0_i32_1 = arith.constant 0 : i32
    %c0_i32_2 = arith.constant 0 : i32
    return %c0_i32, %c0_i32_0, %c0_i32_1 : i32, i32, i32
  }
  func.func @transform_3(%arg0: i32) -> (i32, i32) {
    %c0_i32 = arith.constant 0 : i32
    %c0_i32_0 = arith.constant 0 : i32
    %c0_i32_1 = arith.constant 0 : i32
    return %c0_i32, %c0_i32_0 : i32, i32
  }
  func.func @transform_4(%arg0: i32) -> (i32, i32, i32) {
    %c0_i32 = arith.constant 0 : i32
    %c0_i32_0 = arith.constant 0 : i32
    %c0_i32_1 = arith.constant 0 : i32
    return %arg0, %c0_i32, %c0_i32_0 : i32, i32, i32
  }
}

</mosaic_0001>

<llo_original>
// kernel: tpu_custom_call.1
$region0: #{tpu_custom_call.1}
  #allocation0 [shape = 'u32[]', space=smem, size = 0x4, offset = 0x4, fixed_abs, tag = 'smem constant byte address 0x4 - core index']
  #allocation1 [shape = 'u32[144,128]{1,0:T(1,128)}', space=vmem, size = 0x12000, scoped, tag = 'internal scratch']
  %s0 = inlined_call_operand.vmem [shape: f32[2,16,64], index: 0, kind: input, shape index: {}]
  %s1 = inlined_call_operand.vmem [shape: f32[3,32,16], index: 1, kind: input, shape index: {}]
  %s2 = inlined_call_operand.hbm [shape: f32[3,64,256], index: 2, kind: input, shape index: {}]
  %s3 = inlined_call_operand.vmem [shape: f32[1,256], index: 3, kind: input, shape index: {}]
  %s4 = inlined_call_operand.hbm [shape: f32[2,32,256], index: 4, kind: output, shape index: {}]
  %s5 = sld [smem:[#allocation0]]
  $region53: #{tpu_custom_call.1} parent=0
    _
  %s7 = ssub.s32 1, %s5
  %s8 = scalar_select 0, %s7, %s5
  $region1: #{tpu_custom_call.1} parent=0
    #allocation2 [shape = 'u8[196608]{0}', space=vmem, size = 0x30000, scoped, tag = 'input window, operand 2, single buffered']
    #allocation3 [shape = 's32[2]{0}', space=sflag, size = 0x8, scoped, tag = 'scoped memory for tpu_custom_call.1']
    #allocation4 [shape = 's32[2]{0}', space=sflag, size = 0x8, scoped, tag = 'scoped memory for tpu_custom_call.1']
    #allocation5 [shape = 'u8[65536]{0}', space=vmem, size = 0x10000, scoped, tag = 'output window, operand 0']
    %9 = vsyncpa [#allocation3], 0
    %10 = vsyncpa [#allocation4], 0
    %s11 = scalar_lea.sflag [#allocation4], 1
    %12 = vsyncpa %s11, 0
    loop: start=0, step=1, limit=4
    $region2: #{tpu_custom_call.1} parent=1 // loop_pre_header
      _
    $region3: #{tpu_custom_call.1} parent=1 // loop_header
      %s14 = sphi 0, %s18
      %p15 = scmp.ge.s32.totalorder %s14, 4
      %s24 = sphi 0, %s26
      %s27 = sphi 0, %s24
      %s28 = sphi 0, %s27
      %s44 = sphi 0, %s28
      %s48 = sphi 0, %s48
      %s50 = sphi 0, %s48
      %s51 = sphi 0, %s50
      %s65 = sphi 0, %s51
      %s69 = sphi 0, %s69
      %s71 = sphi 0, %s69
      %s72 = sphi 0, %s71
      %s86 = sphi 0, %s72
      %s90 = sphi 0, %s90
      %s92 = sphi 0, %s90
      %s93 = sphi 0, %s92
      %s107 = sphi 0, %s93
      %s113 = sphi 0, %s115
      %s116 = sphi 0, %s113
      %s117 = sphi 0, %s116
      %s133 = sphi 0, %s117
    $region4: #{tpu_custom_call.1} parent=1 // loop_header_branch
      %17 = sbr.rel (%p15) target = $region8
    $region5: #{tpu_custom_call.1} parent=1 // loop_body
      %s19 = ssub.s32 %s14, 1
      %s20 = ssub.s32 %s14, 2
      %s21 = sadd.s32 %s14, 1
      %s22 = ssub.s32 %s14, %s21
      %p23 = scmp.eq.s32.totalorder %s22, 0
      %s25 = sadd.s32 %s24, 1
      %s26 = scalar_select %p23, %s24, %s25
      %p29 = pneg %p23
      %p30 = scmp.eq.s32.totalorder %s14, 1
      %p31 = por %p29, %p30
      %p32 = scmp.ne.s32.totalorder %s24, %s27
      %p33 = scmp.eq.s32.totalorder %s14, 0
      %p34 = por %p32, %p33
      %p35 = scmp.ne.s32.totalorder %s24, %s27
      %p36 = scmp.eq.s32.totalorder %s19, 1
      %p37 = por %p35, %p36
      %p38 = scmp.ne.s32.totalorder %s27, %s28
      %p39 = scmp.eq.s32.totalorder %s19, 0
      %p40 = por %p38, %p39
      %p41 = scmp.ne.s32.totalorder %s27, %s28
      %p42 = scmp.eq.s32.totalorder %s20, 1
      %p43 = por %p41, %p42
      %p45 = scmp.ne.s32.totalorder %s28, %s44
      %p46 = scmp.eq.s32.totalorder %s20, 0
      %p47 = por %p45, %p46
      %s49 = sadd.s32 %s48, 1
      %p52 = scmp.eq.s32.totalorder %s14, 1
      %p53 = scmp.ne.s32.totalorder %s48, %s50
      %p54 = scmp.eq.s32.totalorder %s14, 0
      %p55 = por %p53, %p54
      %p56 = scmp.ne.s32.totalorder %s48, %s50
      %p57 = scmp.eq.s32.totalorder %s19, 1
      %p58 = por %p56, %p57
      %p59 = scmp.ne.s32.totalorder %s50, %s51
      %p60 = scmp.eq.s32.totalorder %s19, 0
      %p61 = por %p59, %p60
      %p62 = scmp.ne.s32.totalorder %s50, %s51
      %p63 = scmp.eq.s32.totalorder %s20, 1
      %p64 = por %p62, %p63
      %p66 = scmp.ne.s32.totalorder %s51, %s65
      %p67 = scmp.eq.s32.totalorder %s20, 0
      %p68 = por %p66, %p67
      %s70 = sadd.s32 %s69, 1
      %p73 = scmp.eq.s32.totalorder %s14, 1
      %p74 = scmp.ne.s32.totalorder %s69, %s71
      %p75 = scmp.eq.s32.totalorder %s14, 0
      %p76 = por %p74, %p75
      %p77 = scmp.ne.s32.totalorder %s69, %s71
      %p78 = scmp.eq.s32.totalorder %s19, 1
      %p79 = por %p77, %p78
      %p80 = scmp.ne.s32.totalorder %s71, %s72
      %p81 = scmp.eq.s32.totalorder %s19, 0
      %p82 = por %p80, %p81
      %p83 = scmp.ne.s32.totalorder %s71, %s72
      %p84 = scmp.eq.s32.totalorder %s20, 1
      %p85 = por %p83, %p84
      %p87 = scmp.ne.s32.totalorder %s72, %s86
      %p88 = scmp.eq.s32.totalorder %s20, 0
      %p89 = por %p87, %p88
      %s91 = sadd.s32 %s90, 1
      %p94 = scmp.eq.s32.totalorder %s14, 1
      %p95 = scmp.ne.s32.totalorder %s90, %s92
      %p96 = scmp.eq.s32.totalorder %s14, 0
      %p97 = por %p95, %p96
      %p98 = scmp.ne.s32.totalorder %s90, %s92
      %p99 = scmp.eq.s32.totalorder %s19, 1
      %p100 = por %p98, %p99
      %p101 = scmp.ne.s32.totalorder %s92, %s93
      %p102 = scmp.eq.s32.totalorder %s19, 0
      %p103 = por %p101, %p102
      %p104 = scmp.ne.s32.totalorder %s92, %s93
      %p105 = scmp.eq.s32.totalorder %s20, 1
      %p106 = por %p104, %p105
      %p108 = scmp.ne.s32.totalorder %s93, %s107
      %p109 = scmp.eq.s32.totalorder %s20, 0
      %p110 = por %p108, %p109
      %s111 = ssub.s32 %s14, %s21
      %p112 = scmp.eq.s32.totalorder %s111, 0
      %s114 = sadd.s32 %s113, 1
      %s115 = scalar_select %p112, %s113, %s114
      %p118 = pneg %p112
      %p119 = scmp.eq.s32.totalorder %s14, 1
      %p120 = por %p118, %p119
      %p121 = scmp.ne.s32.totalorder %s113, %s116
      %p122 = scmp.eq.s32.totalorder %s14, 0
      %p123 = por %p121, %p122
      %p124 = scmp.ne.s32.totalorder %s113, %s116
      %p125 = scmp.eq.s32.totalorder %s19, 1
      %p126 = por %p124, %p125
      %p127 = scmp.ne.s32.totalorder %s116, %s117
      %p128 = scmp.eq.s32.totalorder %s19, 0
      %p129 = por %p127, %p128
      %p130 = scmp.ne.s32.totalorder %s116, %s117
      %p131 = scmp.eq.s32.totalorder %s20, 1
      %p132 = por %p130, %p131
      %p134 = scmp.ne.s32.totalorder %s117, %s133
      %p135 = scmp.eq.s32.totalorder %s20, 0
      %p136 = por %p134, %p135
      %p137 = scmp.le.s32.totalorder 1, %s14
      %p138 = scmp.lt.s32.totalorder %s14, 3
      %p139 = pnand %p137, %p138
      %p140 = pneg %p139
      // Predicated region
      $region9: #{tpu_custom_call.1} parent=5 // pred_check
        _
      $region10: #{tpu_custom_call.1} parent=5 // pred_check_branch
        %142 = sbr.rel (%p139) target = $region12
      $region11: #{tpu_custom_call.1} parent=5 // pred_region
        %s143 = ssub.s32 %s14, 1
        // Predicated region
        $region13: #{tpu_custom_call.1} parent=11 // pred_check
          %p144 = pneg %p61
        $region14: #{tpu_custom_call.1} parent=11 // pred_check_branch
          %146 = sbr.rel (%p144) target = $region16
        $region15: #{tpu_custom_call.1} parent=11 // pred_region
          _
        $region16: #{tpu_custom_call.1} parent=11 // pred_fallthru
          _
        // Predicated region
        $region17: #{tpu_custom_call.1} parent=11 // pred_check
          %p147 = pneg %p82
        $region18: #{tpu_custom_call.1} parent=11 // pred_check_branch
          %149 = sbr.rel (%p147) target = $region20
        $region19: #{tpu_custom_call.1} parent=11 // pred_region
          %s151 = ssub.s32 6144, 6144
          %152 = vsyncadd [#allocation3], %s151
          %s153 = sshll.u32 [#allocation2], 4
          %s154 = int_to_ptr.vmem [resolvable:$true] %s153
          %159 = dma.hbm_to_vmem [thread:$0]  %s2, 6144, %s154, [#allocation3], 256, 256, 16
        $region20: #{tpu_custom_call.1} parent=11 // pred_fallthru
          _
        // Predicated region
        $region21: #{tpu_custom_call.1} parent=11 // pred_check
          %p160 = pneg %p103
        $region22: #{tpu_custom_call.1} parent=11 // pred_check_branch
          %162 = sbr.rel (%p160) target = $region24
        $region23: #{tpu_custom_call.1} parent=11 // pred_region
          _
        $region24: #{tpu_custom_call.1} parent=11 // pred_fallthru
          _
      $region12: #{tpu_custom_call.1} parent=5 // pred_fallthru
        _
      %p163 = scmp.lt.s32.totalorder %s14, 2
      // Predicated region
      $region25: #{tpu_custom_call.1} parent=5 // pred_check
        %p164 = pneg %p163
      $region26: #{tpu_custom_call.1} parent=5 // pred_check_branch
        %166 = sbr.rel (%p164) target = $region28
      $region27: #{tpu_custom_call.1} parent=5 // pred_region
        // Predicated region
        $region29: #{tpu_custom_call.1} parent=27 // pred_check
          %p167 = pneg %p34
        $region30: #{tpu_custom_call.1} parent=27 // pred_check_branch
          %169 = sbr.rel (%p167) target = $region32
        $region31: #{tpu_custom_call.1} parent=27 // pred_region
          %p170 = scmp.lt.s32.totalorder %s14, 1
          %s171 = scalar_select %p170, %s14, 1
          %s172 = smul.addr %s171, 2
          %s173 = smul.addr %s172, 8
          %s174 = scalar_lea.vmem %s0, %s173
        $region32: #{tpu_custom_call.1} parent=27 // pred_fallthru
          _
      $region28: #{tpu_custom_call.1} parent=5 // pred_fallthru
        _
      %p175 = scmp.le.s32.totalorder 1, %s14
      %p176 = scmp.lt.s32.totalorder %s14, 3
      %p177 = pnand %p175, %p176
      %p178 = pneg %p177
      // Predicated region
      $region33: #{tpu_custom_call.1} parent=5 // pred_check
        _
      $region34: #{tpu_custom_call.1} parent=5 // pred_check_branch
        %180 = sbr.rel (%p177) target = $region36
      $region35: #{tpu_custom_call.1} parent=5 // pred_region
        %s181 = ssub.s32 %s14, 1
        // Predicated region
        $region37: #{tpu_custom_call.1} parent=35 // pred_check
          %p182 = pneg %p82
        $region38: #{tpu_custom_call.1} parent=35 // pred_check_branch
          %184 = sbr.rel (%p182) target = $region40
        $region39: #{tpu_custom_call.1} parent=35 // pred_region
          %185 = dma.done [#allocation3], 6144
        $region40: #{tpu_custom_call.1} parent=35 // pred_fallthru
          _
        %p186 = scmp.lt.s32.totalorder %s19, 1
        %s187 = scalar_select %p186, %s19, 1
        %s188 = smul.addr %s187, 2
        %s189 = smul.addr %s188, 8
        %s190 = scalar_lea.vmem %s0, %s189
        %p191 = pneg %p40
        %p192 = pneg %p37
        %p193 = pneg %p61
        %p194 = pneg %p58
        %p195 = pneg %p82
        %p196 = pneg %p79
        %p197 = pneg %p103
        %p198 = pneg %p100
        %p199 = pneg %p129
        %p200 = pneg %p126
        %s201 = sand.u32 %s116, 1
        %s202 = scalar_lea.sflag [#allocation4], %s201
        %s203 = sand.u32 %s116, 1
        %s204 = smul.addr %s203, 64
        %s205 = scalar_lea.vmem [#allocation5], %s204
        %p206 = scmp.lt.s32.totalorder %s19, 1
        %s207 = scalar_select %p206, %s19, 1
        %s208 = smul.addr %s207, 2
        %s209 = smul.addr %s208, 8
        %s210 = scalar_lea.vmem %s0, %s209
        %v211 = vld [vmem:[%s210] sm:$0xff]
        %v212 = vld [vmem:[%s210 + $0x8] sm:$0xff]
        %v213 = vld [vmem:[%s1] sm:$0xff]
        %v214 = vld [vmem:[%s1 + $0x8] sm:$0xff]
        %v215 = vld [vmem:[%s1 + $0x10] sm:$0xff]
        %v216 = vld [vmem:[%s1 + $0x18] sm:$0xff]
        %vm217 = vcmask 130048
        %v219 = vsel %vm217, %v213, 0
        %v222 = vsel %vm217, %v214, 0
        %v225 = vsel %vm217, %v215, 0
        %v228 = vsel %vm217, %v216, 0
        %230 = vmatprep.subr.mxu0 0.0
        %231 = vmatpush1.msra.mxu0 0.0
        %232 = vmatprep.subr.mxu0 0.0
        %233 = vmatpush1.msra.mxu0 0.0
        %234 = vmatprep.subr.mxu0 0.0
        %235 = vmatpush1.msra.mxu0 0.0
        %236 = vmatprep.subr.mxu0 0.0
        %237 = vmatpush1.msra.mxu0 0.0
        %238 = vmatprep.subr.mxu0 0.0
        %239 = vmatpush1.msra.mxu0 0.0
        %240 = vmatprep.subr.mxu0 0.0
        %241 = vmatpush1.msra.mxu0 0.0
        %242 = vmatprep.subr.mxu0 0.0
        %243 = vmatpush1.msra.mxu0 0.0
        %244 = vmatprep.subr.mxu0 0.0
        %245 = vmatpush1.msra.mxu0 0.0
        %246 = vmatprep.subr.mxu0 0.0
        %247 = vmatpush1.msra.mxu0 0.0
        %248 = vmatprep.subr.mxu0 0.0
        %249 = vmatpush1.msra.mxu0 0.0
        %250 = vmatprep.subr.mxu0 0.0
        %251 = vmatpush1.msra.mxu0 0.0
        %252 = vmatprep.subr.mxu0 0.0
        %253 = vmatpush1.msra.mxu0 0.0
        %254 = vmatprep.subr.mxu0 0.0
        %255 = vmatpush1.msra.mxu0 0.0
        %256 = vmatprep.subr.mxu0 0.0
        %257 = vmatpush1.msra.mxu0 0.0
        %258 = vmatprep.subr.mxu0 0.0
        %259 = vmatpush1.msra.mxu0 %v212
        %260 = vmatprep.subr.mxu0 0.0
        %261 = vmatpush1.msra.mxu0 %v211
        %262 = vmatprep.subr.mxu0 0.0
        %263 = vmatpush2.msra.mxu0 0.0
        %264 = vmatprep.subr.mxu0 0.0
        %265 = vmatpush2.msra.mxu0 0.0
        %266 = vmatprep.subr.mxu0 0.0
        %267 = vmatpush2.msra.mxu0 0.0
        %268 = vmatprep.subr.mxu0 0.0
        %269 = vmatpush2.msra.mxu0 0.0
        %270 = vmatprep.subr.mxu0 0.0
        %271 = vmatpush2.msra.mxu0 0.0
        %272 = vmatprep.subr.mxu0 0.0
        %273 = vmatpush2.msra.mxu0 0.0
        %274 = vmatprep.subr.mxu0 0.0
        %275 = vmatpush2.msra.mxu0 0.0
        %276 = vmatprep.subr.mxu0 0.0
        %277 = vmatpush2.msra.mxu0 0.0
        %278 = vmatprep.subr.mxu0 0.0
        %279 = vmatpush2.msra.mxu0 0.0
        %280 = vmatprep.subr.mxu0 0.0
        %281 = vmatpush2.msra.mxu0 0.0
        %282 = vmatprep.subr.mxu0 0.0
        %283 = vmatpush2.msra.mxu0 0.0
        %284 = vmatprep.subr.mxu0 0.0
        %285 = vmatpush2.msra.mxu0 0.0
        %286 = vmatprep.subr.mxu0 0.0
        %287 = vmatpush2.msra.mxu0 0.0
        %288 = vmatprep.subr.mxu0 0.0
        %289 = vmatpush2.msra.mxu0 0.0
        %290 = vmatprep.subr.mxu0 0.0
        %291 = vmatpush2.msra.mxu0 0.0
        %292 = vmatprep.subr.mxu0 0.0
        %293 = vmatpush2.msra.mxu0 0.0
        %294 = vmatprep.mubr.f32.mxu0 0.0
        %295 = vmatmul.mubr.f32.gmra.mxu0 %v219
        %v296 = vpop.f32.mrf.mxu0
        %v297 = vadd.f32 0.0, %v296
        %v298 = vpop.f32.mrf.mxu0
        %299 = vmatprep.mubr.f32.mxu0 0.0
        %300 = vmatmul.mubr.f32.gmra.mxu0 %v222
        %v301 = vpop.f32.mrf.mxu0
        %v302 = vadd.f32 0.0, %v301
        %v303 = vpop.f32.mrf.mxu0
        %304 = vmatprep.mubr.f32.mxu0 0.0
        %305 = vmatmul.mubr.f32.gmra.mxu0 %v225
        %v306 = vpop.f32.mrf.mxu0
        %v307 = vadd.f32 0.0, %v306
        %v308 = vpop.f32.mrf.mxu0
        %309 = vmatprep.mubr.f32.mxu0 0.0
        %310 = vmatmul.mubr.f32.gmra.mxu0 %v228
        %v311 = vpop.f32.mrf.mxu0
        %v312 = vadd.f32 0.0, %v311
        %v313 = vpop.f32.mrf.mxu0
        %314 = vdwg.mxu0
        %v315 = vld [vmem:[#allocation2] sm:$0xff]
        %v316 = vld [vmem:[#allocation2 + $0x8] sm:$0xff]
        %v317 = vld [vmem:[#allocation2 + $0x10] sm:$0xff]
        %v318 = vld [vmem:[#allocation2 + $0x18] sm:$0xff]
        %v319 = vld [vmem:[#allocation2 + $0x20] sm:$0xff]
        %v320 = vld [vmem:[#allocation2 + $0x28] sm:$0xff]
        %v321 = vld [vmem:[#allocation2 + $0x30] sm:$0xff]
        %v322 = vld [vmem:[#allocation2 + $0x38] sm:$0xff]
        %v323 = vld [vmem:[#allocation2 + $0x40] sm:$0xff]
        %v324 = vld [vmem:[#allocation2 + $0x48] sm:$0xff]
        %v325 = vld [vmem:[#allocation2 + $0x50] sm:$0xff]
        %v326 = vld [vmem:[#allocation2 + $0x58] sm:$0xff]
        %v327 = vld [vmem:[#allocation2 + $0x60] sm:$0xff]
        %v328 = vld [vmem:[#allocation2 + $0x68] sm:$0xff]
        %v329 = vld [vmem:[#allocation2 + $0x70] sm:$0xff]
        %v330 = vld [vmem:[#allocation2 + $0x78] sm:$0xff]
        %s331 = scalar_lea.vmem %s1, 32
        %v332 = vld [vmem:[%s331] sm:$0xff]
        %v333 = vld [vmem:[%s331 + $0x8] sm:$0xff]
        %v334 = vld [vmem:[%s331 + $0x10] sm:$0xff]
        %v335 = vld [vmem:[%s331 + $0x18] sm:$0xff]
        %v337 = vsel %vm217, %v332, 0
        %v340 = vsel %vm217, %v333, 0
        %v343 = vsel %vm217, %v334, 0
        %v346 = vsel %vm217, %v335, 0
        %348 = vmatprep.subr.mxu0 0.0
        %349 = vmatpush1.msra.mxu0 0.0
        %350 = vmatprep.subr.mxu0 0.0
        %351 = vmatpush1.msra.mxu0 0.0
        %352 = vmatprep.subr.mxu0 0.0
        %353 = vmatpush1.msra.mxu0 0.0
        %354 = vmatprep.subr.mxu0 0.0
        %355 = vmatpush1.msra.mxu0 0.0
        %356 = vmatprep.subr.mxu0 0.0
        %357 = vmatpush1.msra.mxu0 0.0
        %358 = vmatprep.subr.mxu0 0.0
        %359 = vmatpush1.msra.mxu0 0.0
        %360 = vmatprep.subr.mxu0 0.0
        %361 = vmatpush1.msra.mxu0 0.0
        %362 = vmatprep.subr.mxu0 0.0
        %363 = vmatpush1.msra.mxu0 0.0
        %364 = vmatprep.subr.mxu0 0.0
        %365 = vmatpush1.msra.mxu0 0.0
        %366 = vmatprep.subr.mxu0 0.0
        %367 = vmatpush1.msra.mxu0 0.0
        %368 = vmatprep.subr.mxu0 0.0
        %369 = vmatpush1.msra.mxu0 0.0
        %370 = vmatprep.subr.mxu0 0.0
        %371 = vmatpush1.msra.mxu0 0.0
        %372 = vmatprep.subr.mxu0 0.0
        %373 = vmatpush1.msra.mxu0 0.0
        %374 = vmatprep.subr.mxu0 0.0
        %375 = vmatpush1.msra.mxu0 0.0
        %376 = vmatprep.subr.mxu0 0.0
        %377 = vmatpush1.msra.mxu0 %v212
        %378 = vmatprep.subr.mxu0 0.0
        %379 = vmatpush1.msra.mxu0 %v211
        %380 = vmatprep.subr.mxu0 0.0
        %381 = vmatpush2.msra.mxu0 0.0
        %382 = vmatprep.subr.mxu0 0.0
        %383 = vmatpush2.msra.mxu0 0.0
        %384 = vmatprep.subr.mxu0 0.0
        %385 = vmatpush2.msra.mxu0 0.0
        %386 = vmatprep.subr.mxu0 0.0
        %387 = vmatpush2.msra.mxu0 0.0
        %388 = vmatprep.subr.mxu0 0.0
        %389 = vmatpush2.msra.mxu0 0.0
        %390 = vmatprep.subr.mxu0 0.0
        %391 = vmatpush2.msra.mxu0 0.0
        %392 = vmatprep.subr.mxu0 0.0
        %393 = vmatpush2.msra.mxu0 0.0
        %394 = vmatprep.subr.mxu0 0.0
        %395 = vmatpush2.msra.mxu0 0.0
        %396 = vmatprep.subr.mxu0 0.0
        %397 = vmatpush2.msra.mxu0 0.0
        %398 = vmatprep.subr.mxu0 0.0
        %399 = vmatpush2.msra.mxu0 0.0
        %400 = vmatprep.subr.mxu0 0.0
        %401 = vmatpush2.msra.mxu0 0.0
        %402 = vmatprep.subr.mxu0 0.0
        %403 = vmatpush2.msra.mxu0 0.0
        %404 = vmatprep.subr.mxu0 0.0
        %405 = vmatpush2.msra.mxu0 0.0
        %406 = vmatprep.subr.mxu0 0.0
        %407 = vmatpush2.msra.mxu0 0.0
        %408 = vmatprep.subr.mxu0 0.0
        %409 = vmatpush2.msra.mxu0 0.0
        %410 = vmatprep.subr.mxu0 0.0
        %411 = vmatpush2.msra.mxu0 0.0
        %412 = vmatprep.mubr.f32.mxu0 0.0
        %413 = vmatmul.mubr.f32.gmra.mxu0 %v337
        %v414 = vpop.f32.mrf.mxu0
        %v415 = vadd.f32 0.0, %v414
        %v416 = vpop.f32.mrf.mxu0
        %417 = vmatprep.mubr.f32.mxu0 0.0
        %418 = vmatmul.mubr.f32.gmra.mxu0 %v340
        %v419 = vpop.f32.mrf.mxu0
        %v420 = vadd.f32 0.0, %v419
        %v421 = vpop.f32.mrf.mxu0
        %422 = vmatprep.mubr.f32.mxu0 0.0
        %423 = vmatmul.mubr.f32.gmra.mxu0 %v343
        %v424 = vpop.f32.mrf.mxu0
        %v425 = vadd.f32 0.0, %v424
        %v426 = vpop.f32.mrf.mxu0
        %427 = vmatprep.mubr.f32.mxu0 0.0
        %428 = vmatmul.mubr.f32.gmra.mxu0 %v346
        %v429 = vpop.f32.mrf.mxu0
        %v430 = vadd.f32 0.0, %v429
        %v431 = vpop.f32.mrf.mxu0
        %432 = vdwg.mxu0
        %s433 = scalar_lea.vmem [#allocation2], 128
        %v434 = vld [vmem:[%s433] sm:$0xff]
        %v435 = vld [vmem:[%s433 + $0x8] sm:$0xff]
        %v436 = vld [vmem:[%s433 + $0x10] sm:$0xff]
        %v437 = vld [vmem:[%s433 + $0x18] sm:$0xff]
        %v438 = vld [vmem:[%s433 + $0x20] sm:$0xff]
        %v439 = vld [vmem:[%s433 + $0x28] sm:$0xff]
        %v440 = vld [vmem:[%s433 + $0x30] sm:$0xff]
        %v441 = vld [vmem:[%s433 + $0x38] sm:$0xff]
        %v442 = vld [vmem:[%s433 + $0x40] sm:$0xff]
        %v443 = vld [vmem:[%s433 + $0x48] sm:$0xff]
        %v444 = vld [vmem:[%s433 + $0x50] sm:$0xff]
        %v445 = vld [vmem:[%s433 + $0x58] sm:$0xff]
        %v446 = vld [vmem:[%s433 + $0x60] sm:$0xff]
        %v447 = vld [vmem:[%s433 + $0x68] sm:$0xff]
        %v448 = vld [vmem:[%s433 + $0x70] sm:$0xff]
        %v449 = vld [vmem:[%s433 + $0x78] sm:$0xff]
        %vm450 = vcmask 523264
        %v452 = vsel %vm450, %v415, 0
        %v455 = vsel %vm450, %v420, 0
        %v458 = vsel %vm450, %v425, 0
        %v461 = vsel %vm450, %v430, 0
        %463 = vmatprep.subr.mxu0 0.0
        %464 = vmatpush1.msra.mxu0 0.0
        %465 = vmatprep.subr.mxu0 0.0
        %466 = vmatpush1.msra.mxu0 0.0
        %467 = vmatprep.subr.mxu0 0.0
        %468 = vmatpush1.msra.mxu0 0.0
        %469 = vmatprep.subr.mxu0 0.0
        %470 = vmatpush1.msra.mxu0 0.0
        %471 = vmatprep.subr.mxu0 0.0
        %472 = vmatpush1.msra.mxu0 0.0
        %473 = vmatprep.subr.mxu0 0.0
        %474 = vmatpush1.msra.mxu0 0.0
        %475 = vmatprep.subr.mxu0 0.0
        %476 = vmatpush1.msra.mxu0 0.0
        %477 = vmatprep.subr.mxu0 0.0
        %478 = vmatpush1.msra.mxu0 0.0
        %479 = vmatprep.subr.mxu0 %v449
        %480 = vmatpush1.msra.mxu0 %v448
        %481 = vmatprep.subr.mxu0 %v447
        %482 = vmatpush1.msra.mxu0 %v446
        %483 = vmatprep.subr.mxu0 %v445
        %484 = vmatpush1.msra.mxu0 %v444
        %485 = vmatprep.subr.mxu0 %v443
        %486 = vmatpush1.msra.mxu0 %v442
        %487 = vmatprep.subr.mxu0 %v441
        %488 = vmatpush1.msra.mxu0 %v440
        %489 = vmatprep.subr.mxu0 %v439
        %490 = vmatpush1.msra.mxu0 %v438
        %491 = vmatprep.subr.mxu0 %v437
        %492 = vmatpush1.msra.mxu0 %v436
        %493 = vmatprep.subr.mxu0 %v435
        %494 = vmatpush1.msra.mxu0 %v434
        %495 = vmatprep.subr.mxu0 0.0
        %496 = vmatpush2.msra.mxu0 0.0
        %497 = vmatprep.subr.mxu0 0.0
        %498 = vmatpush2.msra.mxu0 0.0
        %499 = vmatprep.subr.mxu0 0.0
        %500 = vmatpush2.msra.mxu0 0.0
        %501 = vmatprep.subr.mxu0 0.0
        %502 = vmatpush2.msra.mxu0 0.0
        %503 = vmatprep.subr.mxu0 0.0
        %504 = vmatpush2.msra.mxu0 0.0
        %505 = vmatprep.subr.mxu0 0.0
        %506 = vmatpush2.msra.mxu0 0.0
        %507 = vmatprep.subr.mxu0 0.0
        %508 = vmatpush2.msra.mxu0 0.0
        %509 = vmatprep.subr.mxu0 0.0
        %510 = vmatpush2.msra.mxu0 0.0
        %511 = vmatprep.subr.mxu0 0.0
        %512 = vmatpush2.msra.mxu0 0.0
        %513 = vmatprep.subr.mxu0 0.0
        %514 = vmatpush2.msra.mxu0 0.0
        %515 = vmatprep.subr.mxu0 0.0
        %516 = vmatpush2.msra.mxu0 0.0
        %517 = vmatprep.subr.mxu0 0.0
        %518 = vmatpush2.msra.mxu0 0.0
        %519 = vmatprep.subr.mxu0 0.0
        %520 = vmatpush2.msra.mxu0 0.0
        %521 = vmatprep.subr.mxu0 0.0
        %522 = vmatpush2.msra.mxu0 0.0
        %523 = vmatprep.subr.mxu0 0.0
        %524 = vmatpush2.msra.mxu0 0.0
        %525 = vmatprep.subr.mxu0 0.0
        %526 = vmatpush2.msra.mxu0 0.0
        %527 = vmatprep.mubr.f32.mxu0 0.0
        %528 = vmatmul.mubr.f32.gmra.mxu0 %v452
        %v529 = vpop.f32.mrf.mxu0
        %v530 = vadd.f32 0.0, %v529
        %v531 = vpop.f32.mrf.mxu0
        %v532 = vadd.f32 0.0, %v531
        %533 = vmatprep.mubr.f32.mxu0 0.0
        %534 = vmatmul.mubr.f32.gmra.mxu0 %v455
        %v535 = vpop.f32.mrf.mxu0
        %v536 = vadd.f32 0.0, %v535
        %v537 = vpop.f32.mrf.mxu0
        %v538 = vadd.f32 0.0, %v537
        %539 = vmatprep.mubr.f32.mxu0 0.0
        %540 = vmatmul.mubr.f32.gmra.mxu0 %v458
        %v541 = vpop.f32.mrf.mxu0
        %v542 = vadd.f32 0.0, %v541
        %v543 = vpop.f32.mrf.mxu0
        %v544 = vadd.f32 0.0, %v543
        %545 = vmatprep.mubr.f32.mxu0 0.0
        %546 = vmatmul.mubr.f32.gmra.mxu0 %v461
        %v547 = vpop.f32.mrf.mxu0
        %v548 = vadd.f32 0.0, %v547
        %v549 = vpop.f32.mrf.mxu0
        %v550 = vadd.f32 0.0, %v549
        %551 = vdwg.mxu0
        %v553 = vsel %vm450, %v297, 0
        %v556 = vsel %vm450, %v302, 0
        %v559 = vsel %vm450, %v307, 0
        %v562 = vsel %vm450, %v312, 0
        %564 = vmatprep.subr.mxu0 0.0
        %565 = vmatpush1.msra.mxu0 0.0
        %566 = vmatprep.subr.mxu0 0.0
        %567 = vmatpush1.msra.mxu0 0.0
        %568 = vmatprep.subr.mxu0 0.0
        %569 = vmatpush1.msra.mxu0 0.0
        %570 = vmatprep.subr.mxu0 0.0
        %571 = vmatpush1.msra.mxu0 0.0
        %572 = vmatprep.subr.mxu0 0.0
        %573 = vmatpush1.msra.mxu0 0.0
        %574 = vmatprep.subr.mxu0 0.0
        %575 = vmatpush1.msra.mxu0 0.0
        %576 = vmatprep.subr.mxu0 0.0
        %577 = vmatpush1.msra.mxu0 0.0
        %578 = vmatprep.subr.mxu0 0.0
        %579 = vmatpush1.msra.mxu0 0.0
        %580 = vmatprep.subr.mxu0 %v330
        %581 = vmatpush1.msra.mxu0 %v329
        %582 = vmatprep.subr.mxu0 %v328
        %583 = vmatpush1.msra.mxu0 %v327
        %584 = vmatprep.subr.mxu0 %v326
        %585 = vmatpush1.msra.mxu0 %v325
        %586 = vmatprep.subr.mxu0 %v324
        %587 = vmatpush1.msra.mxu0 %v323
        %588 = vmatprep.subr.mxu0 %v322
        %589 = vmatpush1.msra.mxu0 %v321
        %590 = vmatprep.subr.mxu0 %v320
        %591 = vmatpush1.msra.mxu0 %v319
        %592 = vmatprep.subr.mxu0 %v318
        %593 = vmatpush1.msra.mxu0 %v317
        %594 = vmatprep.subr.mxu0 %v316
        %595 = vmatpush1.msra.mxu0 %v315
        %596 = vmatprep.subr.mxu0 0.0
        %597 = vmatpush2.msra.mxu0 0.0
        %598 = vmatprep.subr.mxu0 0.0
        %599 = vmatpush2.msra.mxu0 0.0
        %600 = vmatprep.subr.mxu0 0.0
        %601 = vmatpush2.msra.mxu0 0.0
        %602 = vmatprep.subr.mxu0 0.0
        %603 = vmatpush2.msra.mxu0 0.0
        %604 = vmatprep.subr.mxu0 0.0
        %605 = vmatpush2.msra.mxu0 0.0
        %606 = vmatprep.subr.mxu0 0.0
        %607 = vmatpush2.msra.mxu0 0.0
        %608 = vmatprep.subr.mxu0 0.0
        %609 = vmatpush2.msra.mxu0 0.0
        %610 = vmatprep.subr.mxu0 0.0
        %611 = vmatpush2.msra.mxu0 0.0
        %612 = vmatprep.subr.mxu0 0.0
        %613 = vmatpush2.msra.mxu0 0.0
        %614 = vmatprep.subr.mxu0 0.0
        %615 = vmatpush2.msra.mxu0 0.0
        %616 = vmatprep.subr.mxu0 0.0
        %617 = vmatpush2.msra.mxu0 0.0
        %618 = vmatprep.subr.mxu0 0.0
        %619 = vmatpush2.msra.mxu0 0.0
        %620 = vmatprep.subr.mxu0 0.0
        %621 = vmatpush2.msra.mxu0 0.0
        %622 = vmatprep.subr.mxu0 0.0
        %623 = vmatpush2.msra.mxu0 0.0
        %624 = vmatprep.subr.mxu0 0.0
        %625 = vmatpush2.msra.mxu0 0.0
        %626 = vmatprep.subr.mxu0 0.0
        %627 = vmatpush2.msra.mxu0 0.0
        %628 = vmatprep.mubr.f32.mxu0 0.0
        %629 = vmatmul.mubr.f32.gmra.mxu0 %v553
        %v630 = vpop.f32.mrf.mxu0
        %v631 = vadd.f32 %v530, %v630
        %v632 = vpop.f32.mrf.mxu0
        %v633 = vadd.f32 %v532, %v632
        %634 = vmatprep.mubr.f32.mxu0 0.0
        %635 = vmatmul.mubr.f32.gmra.mxu0 %v556
        %v636 = vpop.f32.mrf.mxu0
        %v637 = vadd.f32 %v536, %v636
        %v638 = vpop.f32.mrf.mxu0
        %v639 = vadd.f32 %v538, %v638
        %640 = vmatprep.mubr.f32.mxu0 0.0
        %641 = vmatmul.mubr.f32.gmra.mxu0 %v559
        %v642 = vpop.f32.mrf.mxu0
        %v643 = vadd.f32 %v542, %v642
        %v644 = vpop.f32.mrf.mxu0
        %v645 = vadd.f32 %v544, %v644
        %646 = vmatprep.mubr.f32.mxu0 0.0
        %647 = vmatmul.mubr.f32.gmra.mxu0 %v562
        %v648 = vpop.f32.mrf.mxu0
        %v649 = vadd.f32 %v548, %v648
        %v650 = vpop.f32.mrf.mxu0
        %v651 = vadd.f32 %v550, %v650
        %652 = vdwg.mxu0
        %s653 = scalar_lea.vmem %s1, 64
        %v654 = vld [vmem:[%s653] sm:$0xff]
        %v655 = vld [vmem:[%s653 + $0x8] sm:$0xff]
        %v656 = vld [vmem:[%s653 + $0x10] sm:$0xff]
        %v657 = vld [vmem:[%s653 + $0x18] sm:$0xff]
        %v659 = vsel %vm217, %v654, 0
        %v662 = vsel %vm217, %v655, 0
        %v665 = vsel %vm217, %v656, 0
        %v668 = vsel %vm217, %v657, 0
        %670 = vmatprep.subr.mxu0 0.0
        %671 = vmatpush1.msra.mxu0 0.0
        %672 = vmatprep.subr.mxu0 0.0
        %673 = vmatpush1.msra.mxu0 0.0
        %674 = vmatprep.subr.mxu0 0.0
        %675 = vmatpush1.msra.mxu0 0.0
        %676 = vmatprep.subr.mxu0 0.0
        %677 = vmatpush1.msra.mxu0 0.0
        %678 = vmatprep.subr.mxu0 0.0
        %679 = vmatpush1.msra.mxu0 0.0
        %680 = vmatprep.subr.mxu0 0.0
        %681 = vmatpush1.msra.mxu0 0.0
        %682 = vmatprep.subr.mxu0 0.0
        %683 = vmatpush1.msra.mxu0 0.0
        %684 = vmatprep.subr.mxu0 0.0
        %685 = vmatpush1.msra.mxu0 0.0
        %686 = vmatprep.subr.mxu0 0.0
        %687 = vmatpush1.msra.mxu0 0.0
        %688 = vmatprep.subr.mxu0 0.0
        %689 = vmatpush1.msra.mxu0 0.0
        %690 = vmatprep.subr.mxu0 0.0
        %691 = vmatpush1.msra.mxu0 0.0
        %692 = vmatprep.subr.mxu0 0.0
        %693 = vmatpush1.msra.mxu0 0.0
        %694 = vmatprep.subr.mxu0 0.0
        %695 = vmatpush1.msra.mxu0 0.0
        %696 = vmatprep.subr.mxu0 0.0
        %697 = vmatpush1.msra.mxu0 0.0
        %698 = vmatprep.subr.mxu0 0.0
        %699 = vmatpush1.msra.mxu0 %v212
        %700 = vmatprep.subr.mxu0 0.0
        %701 = vmatpush1.msra.mxu0 %v211
        %702 = vmatprep.subr.mxu0 0.0
        %703 = vmatpush2.msra.mxu0 0.0
        %704 = vmatprep.subr.mxu0 0.0
        %705 = vmatpush2.msra.mxu0 0.0
        %706 = vmatprep.subr.mxu0 0.0
        %707 = vmatpush2.msra.mxu0 0.0
        %708 = vmatprep.subr.mxu0 0.0
        %709 = vmatpush2.msra.mxu0 0.0
        %710 = vmatprep.subr.mxu0 0.0
        %711 = vmatpush2.msra.mxu0 0.0
        %712 = vmatprep.subr.mxu0 0.0
        %713 = vmatpush2.msra.mxu0 0.0
        %714 = vmatprep.subr.mxu0 0.0
        %715 = vmatpush2.msra.mxu0 0.0
        %716 = vmatprep.subr.mxu0 0.0
        %717 = vmatpush2.msra.mxu0 0.0
        %718 = vmatprep.subr.mxu0 0.0
        %719 = vmatpush2.msra.mxu0 0.0
        %720 = vmatprep.subr.mxu0 0.0
        %721 = vmatpush2.msra.mxu0 0.0
        %722 = vmatprep.subr.mxu0 0.0
        %723 = vmatpush2.msra.mxu0 0.0
        %724 = vmatprep.subr.mxu0 0.0
        %725 = vmatpush2.msra.mxu0 0.0
        %726 = vmatprep.subr.mxu0 0.0
        %727 = vmatpush2.msra.mxu0 0.0
        %728 = vmatprep.subr.mxu0 0.0
        %729 = vmatpush2.msra.mxu0 0.0
        %730 = vmatprep.subr.mxu0 0.0
        %731 = vmatpush2.msra.mxu0 0.0
        %732 = vmatprep.subr.mxu0 0.0
        %733 = vmatpush2.msra.mxu0 0.0
        %734 = vmatprep.mubr.f32.mxu0 0.0
        %735 = vmatmul.mubr.f32.gmra.mxu0 %v659
        %v736 = vpop.f32.mrf.mxu0
        %v737 = vadd.f32 0.0, %v736
        %v738 = vpop.f32.mrf.mxu0
        %739 = vmatprep.mubr.f32.mxu0 0.0
        %740 = vmatmul.mubr.f32.gmra.mxu0 %v662
        %v741 = vpop.f32.mrf.mxu0
        %v742 = vadd.f32 0.0, %v741
        %v743 = vpop.f32.mrf.mxu0
        %744 = vmatprep.mubr.f32.mxu0 0.0
        %745 = vmatmul.mubr.f32.gmra.mxu0 %v665
        %v746 = vpop.f32.mrf.mxu0
        %v747 = vadd.f32 0.0, %v746
        %v748 = vpop.f32.mrf.mxu0
        %749 = vmatprep.mubr.f32.mxu0 0.0
        %750 = vmatmul.mubr.f32.gmra.mxu0 %v668
        %v751 = vpop.f32.mrf.mxu0
        %v752 = vadd.f32 0.0, %v751
        %v753 = vpop.f32.mrf.mxu0
        %754 = vdwg.mxu0
        %s755 = scalar_lea.vmem [#allocation2], 256
        %v756 = vld [vmem:[%s755] sm:$0xff]
        %v757 = vld [vmem:[%s755 + $0x8] sm:$0xff]
        %v758 = vld [vmem:[%s755 + $0x10] sm:$0xff]
        %v759 = vld [vmem:[%s755 + $0x18] sm:$0xff]
        %v760 = vld [vmem:[%s755 + $0x20] sm:$0xff]
        %v761 = vld [vmem:[%s755 + $0x28] sm:$0xff]
        %v762 = vld [vmem:[%s755 + $0x30] sm:$0xff]
        %v763 = vld [vmem:[%s755 + $0x38] sm:$0xff]
        %v764 = vld [vmem:[%s755 + $0x40] sm:$0xff]
        %v765 = vld [vmem:[%s755 + $0x48] sm:$0xff]
        %v766 = vld [vmem:[%s755 + $0x50] sm:$0xff]
        %v767 = vld [vmem:[%s755 + $0x58] sm:$0xff]
        %v768 = vld [vmem:[%s755 + $0x60] sm:$0xff]
        %v769 = vld [vmem:[%s755 + $0x68] sm:$0xff]
        %v770 = vld [vmem:[%s755 + $0x70] sm:$0xff]
        %v771 = vld [vmem:[%s755 + $0x78] sm:$0xff]
        %v773 = vsel %vm450, %v737, 0
        %v776 = vsel %vm450, %v742, 0
        %v779 = vsel %vm450, %v747, 0
        %v782 = vsel %vm450, %v752, 0
        %784 = vmatprep.subr.mxu0 0.0
        %785 = vmatpush1.msra.mxu0 0.0
        %786 = vmatprep.subr.mxu0 0.0
        %787 = vmatpush1.msra.mxu0 0.0
        %788 = vmatprep.subr.mxu0 0.0
        %789 = vmatpush1.msra.mxu0 0.0
        %790 = vmatprep.subr.mxu0 0.0
        %791 = vmatpush1.msra.mxu0 0.0
        %792 = vmatprep.subr.mxu0 0.0
        %793 = vmatpush1.msra.mxu0 0.0
        %794 = vmatprep.subr.mxu0 0.0
        %795 = vmatpush1.msra.mxu0 0.0
        %796 = vmatprep.subr.mxu0 0.0
        %797 = vmatpush1.msra.mxu0 0.0
        %798 = vmatprep.subr.mxu0 0.0
        %799 = vmatpush1.msra.mxu0 0.0
        %800 = vmatprep.subr.mxu0 %v771
        %801 = vmatpush1.msra.mxu0 %v770
        %802 = vmatprep.subr.mxu0 %v769
        %803 = vmatpush1.msra.mxu0 %v768
        %804 = vmatprep.subr.mxu0 %v767
        %805 = vmatpush1.msra.mxu0 %v766
        %806 = vmatprep.subr.mxu0 %v765
        %807 = vmatpush1.msra.mxu0 %v764
        %808 = vmatprep.subr.mxu0 %v763
        %809 = vmatpush1.msra.mxu0 %v762
        %810 = vmatprep.subr.mxu0 %v761
        %811 = vmatpush1.msra.mxu0 %v760
        %812 = vmatprep.subr.mxu0 %v759
        %813 = vmatpush1.msra.mxu0 %v758
        %814 = vmatprep.subr.mxu0 %v757
        %815 = vmatpush1.msra.mxu0 %v756
        %816 = vmatprep.subr.mxu0 0.0
        %817 = vmatpush2.msra.mxu0 0.0
        %818 = vmatprep.subr.mxu0 0.0
        %819 = vmatpush2.msra.mxu0 0.0
        %820 = vmatprep.subr.mxu0 0.0
        %821 = vmatpush2.msra.mxu0 0.0
        %822 = vmatprep.subr.mxu0 0.0
        %823 = vmatpush2.msra.mxu0 0.0
        %824 = vmatprep.subr.mxu0 0.0
        %825 = vmatpush2.msra.mxu0 0.0
        %826 = vmatprep.subr.mxu0 0.0
        %827 = vmatpush2.msra.mxu0 0.0
        %828 = vmatprep.subr.mxu0 0.0
        %829 = vmatpush2.msra.mxu0 0.0
        %830 = vmatprep.subr.mxu0 0.0
        %831 = vmatpush2.msra.mxu0 0.0
        %832 = vmatprep.subr.mxu0 0.0
        %833 = vmatpush2.msra.mxu0 0.0
        %834 = vmatprep.subr.mxu0 0.0
        %835 = vmatpush2.msra.mxu0 0.0
        %836 = vmatprep.subr.mxu0 0.0
        %837 = vmatpush2.msra.mxu0 0.0
        %838 = vmatprep.subr.mxu0 0.0
        %839 = vmatpush2.msra.mxu0 0.0
        %840 = vmatprep.subr.mxu0 0.0
        %841 = vmatpush2.msra.mxu0 0.0
        %842 = vmatprep.subr.mxu0 0.0
        %843 = vmatpush2.msra.mxu0 0.0
        %844 = vmatprep.subr.mxu0 0.0
        %845 = vmatpush2.msra.mxu0 0.0
        %846 = vmatprep.subr.mxu0 0.0
        %847 = vmatpush2.msra.mxu0 0.0
        %848 = vmatprep.mubr.f32.mxu0 0.0
        %849 = vmatmul.mubr.f32.gmra.mxu0 %v773
        %v850 = vpop.f32.mrf.mxu0
        %v851 = vadd.f32 0.0, %v850
        %v852 = vpop.f32.mrf.mxu0
        %v853 = vadd.f32 0.0, %v852
        %854 = vmatprep.mubr.f32.mxu0 0.0
        %855 = vmatmul.mubr.f32.gmra.mxu0 %v776
        %v856 = vpop.f32.mrf.mxu0
        %v857 = vadd.f32 0.0, %v856
        %v858 = vpop.f32.mrf.mxu0
        %v859 = vadd.f32 0.0, %v858
        %860 = vmatprep.mubr.f32.mxu0 0.0
        %861 = vmatmul.mubr.f32.gmra.mxu0 %v779
        %v862 = vpop.f32.mrf.mxu0
        %v863 = vadd.f32 0.0, %v862
        %v864 = vpop.f32.mrf.mxu0
        %v865 = vadd.f32 0.0, %v864
        %866 = vmatprep.mubr.f32.mxu0 0.0
        %867 = vmatmul.mubr.f32.gmra.mxu0 %v782
        %v868 = vpop.f32.mrf.mxu0
        %v869 = vadd.f32 0.0, %v868
        %v870 = vpop.f32.mrf.mxu0
        %v871 = vadd.f32 0.0, %v870
        %872 = vdwg.mxu0
        %v873 = vadd.f32 %v631, %v851
        %v874 = vadd.f32 %v633, %v853
        %v875 = vadd.f32 %v637, %v857
        %v876 = vadd.f32 %v639, %v859
        %v877 = vadd.f32 %v643, %v863
        %v878 = vadd.f32 %v645, %v865
        %v879 = vadd.f32 %v649, %v869
        %v880 = vadd.f32 %v651, %v871
        %v881 = vld [vmem:[%s3] sm:$0x3]
        %v883 = vlaneseq
        %v884 = vshrl.u32 %v883, 7
        %v885 = vsub.s32 0, %v884
        %v886 = vrot.slane %v881, %v885
        %v887 = vlaneseq
        %v888 = vshrl.u32 %v887, 7
        %v889 = vsub.s32 1, %v888
        %v890 = vrot.slane %v881, %v889
        %v893 = vadd.f32 %v873, %v886
        %v894 = vadd.f32 %v874, %v890
        %v895 = vadd.f32 %v875, %v886
        %v896 = vadd.f32 %v876, %v890
        %v897 = vadd.f32 %v877, %v886
        %v898 = vadd.f32 %v878, %v890
        %v899 = vadd.f32 %v879, %v886
        %v900 = vadd.f32 %v880, %v890
        %v901 = vmax.f32 %v893, 0.0
        %v902 = vmax.f32 %v894, 0.0
        %v903 = vmax.f32 %v895, 0.0
        %v904 = vmax.f32 %v896, 0.0
        %v905 = vmax.f32 %v897, 0.0
        %v906 = vmax.f32 %v898, 0.0
        %v907 = vmax.f32 %v899, 0.0
        %v908 = vmax.f32 %v900, 0.0
        %909 = vst [vmem:[%s205] sm:$0xff] %v901
        %910 = vst [vmem:[%s205 + $0x8] sm:$0xff] %v902
        %911 = vst [vmem:[%s205 + $0x10] sm:$0xff] %v903
        %912 = vst [vmem:[%s205 + $0x18] sm:$0xff] %v904
        %913 = vst [vmem:[%s205 + $0x20] sm:$0xff] %v905
        %914 = vst [vmem:[%s205 + $0x28] sm:$0xff] %v906
        %915 = vst [vmem:[%s205 + $0x30] sm:$0xff] %v907
        %916 = vst [vmem:[%s205 + $0x38] sm:$0xff] %v908
        %s917 = sand.u32 %s116, 1
        %s918 = scalar_lea.sflag [#allocation4], %s917
        %s919 = sand.u32 %s116, 1
        %s920 = smul.addr %s919, 64
        %s921 = scalar_lea.vmem [#allocation5], %s920
        // Predicated region
        $region41: #{tpu_custom_call.1} parent=35 // pred_check
          %p922 = pneg %p126
        $region42: #{tpu_custom_call.1} parent=35 // pred_check_branch
          %924 = sbr.rel (%p922) target = $region44
        $region43: #{tpu_custom_call.1} parent=35 // pred_region
          %s926 = ssub.s32 1024, 1024
          %927 = vsyncadd %s918, %s926
          %s928 = smul.addr %s19, 8
          %s929 = smul.addr %s928, 128
          %s930 = scalar_lea.hbm %s4, %s929
          %s931 = sshll.u32 %s921, 4
          %s932 = int_to_ptr.vmem [resolvable:$true] %s931
          %937 = dma.vmem_to_hbm [thread:$0]  %s932, 1024, %s930, %s918, 256, 256, 16
        $region44: #{tpu_custom_call.1} parent=35 // pred_fallthru
          _
      $region36: #{tpu_custom_call.1} parent=5 // pred_fallthru
        _
      %p938 = scmp.le.s32.totalorder 2, %s14
      // Predicated region
      $region45: #{tpu_custom_call.1} parent=5 // pred_check
        %p939 = pneg %p938
      $region46: #{tpu_custom_call.1} parent=5 // pred_check_branch
        %941 = sbr.rel (%p939) target = $region48
      $region47: #{tpu_custom_call.1} parent=5 // pred_region
        %s942 = ssub.s32 %s14, 2
        // Predicated region
        $region49: #{tpu_custom_call.1} parent=47 // pred_check
          %p943 = pneg %p132
        $region50: #{tpu_custom_call.1} parent=47 // pred_check_branch
          %945 = sbr.rel (%p943) target = $region52
        $region51: #{tpu_custom_call.1} parent=47 // pred_region
          %s946 = sand.u32 %s117, 1
          %s947 = scalar_lea.sflag [#allocation4], %s946
          %s948 = sand.u32 %s117, 1
          %s949 = smul.addr %s948, 64
          %s950 = scalar_lea.vmem [#allocation5], %s949
          %951 = dma.done %s947, 1024
        $region52: #{tpu_custom_call.1} parent=47 // pred_fallthru
          _
      $region48: #{tpu_custom_call.1} parent=5 // pred_fallthru
        _
    $region6: #{tpu_custom_call.1} parent=1 // loop_footer
      %s18 = sadd.s32 1, %s14
    $region7: #{tpu_custom_call.1} parent=1 // loop_footer_branch
      %13 = sbr.rel target = $region3
    $region8: #{tpu_custom_call.1} parent=1 // loop_exit
      _
    %952 = vsyncpa [#allocation3], 1
    %s953 = scalar_lea.sflag [#allocation3], 1
    %954 = vsyncpa %s953, 1
    %955 = vsyncpa [#allocation4], 1
    %s956 = scalar_lea.sflag [#allocation4], 1
    %957 = vsyncpa %s956, 1

</llo_original>
